<compile_context>
chip_gen: v5e
topology: v5e:2x2
jax: 0.10.0
libtpu: 0.0.40
codegen_flags: <defaults>
</compile_context>

<pallas_src>
import functools

import jax
import jax.numpy as jnp
from jax.experimental import pallas as pl
from jax.experimental.pallas import tpu as pltpu


def _static_pow(x, gamma):
    """x ** gamma with repeated multiplies when gamma is a small integer."""
    if float(gamma).is_integer() and 0 <= int(gamma) <= 16:
        g = int(gamma)
        if g == 0:
            return jnp.ones_like(x)
        acc = x
        for _ in range(g - 1):
            acc = acc * x
        return acc
    return x ** jnp.float32(gamma)


def _efl_kernel(x_ref, t_ref, f_ref, s_ref, *,
                alpha, gamma, n_total, tile_n, tiles_per_split):
    j = pl.program_id(1)

    # Per-split resident vector accumulators live in the output blocks.
    @pl.when(j == 0)
    def _():
        f_ref[...] = jnp.zeros_like(f_ref)
        s_ref[...] = jnp.zeros_like(s_ref)

    x = x_ref[...].astype(jnp.float32)          # (C, tile_n), lane-dense in N
    t = t_ref[...]                              # (1, tile_n) int32

    c = x.shape[0]
    cls = jax.lax.broadcasted_iota(jnp.int32, (c, tile_n), 0)
    onehot = cls == t                           # (C, tile_n)

    # Numerically-stable softmax pieces; class reduction runs over sublanes.
    col_max = jnp.max(x, axis=0, keepdims=True)             # (1, tile_n)
    z = x - col_max
    ez = jnp.exp(z)
    sum_exp = jnp.sum(ez, axis=0, keepdims=True)            # (1, tile_n)
    z_t = jnp.sum(jnp.where(onehot, z, 0.0), axis=0, keepdims=True)
    ez_t = jnp.sum(jnp.where(onehot, ez, 0.0), axis=0, keepdims=True)

    ce = jnp.log(sum_exp) - z_t                              # (1, tile_n)
    pt = ez_t / sum_exp                                      # == exp(-ce), no extra EUP exp
    one_minus_pt = jnp.maximum(1.0 - pt, 0.0)
    focal = jnp.float32(alpha) * _static_pow(one_minus_pt, gamma) * ce

    # Mask rows that are zero-padding of the batch dimension.
    block_idx = pl.program_id(0) * tiles_per_split + j
    col = jax.lax.broadcasted_iota(jnp.int32, (1, tile_n), 1)
    valid = (block_idx * tile_n + col) < n_total
    focal = jnp.where(valid, focal, 0.0)

    # Lane-dense elementwise accumulation; no per-step cross-lane reduce.
    f_ref[0] = f_ref[0] + focal
    s_ref[0] = s_ref[0] + jnp.sum(x * x, axis=0, keepdims=True)


def equalized_focal_loss_with_regularizer(inputs, targets, *,
                                          alpha=0.25, gamma=2.0,
                                          regularizer_weight=0.001,
                                          tile_n=1024):
    """inputs: (N, C) float logits (any float dtype); targets: (N,) int labels."""
    n, c = inputs.shape
    itemsize = jnp.dtype(inputs.dtype).itemsize

    def round_up(v, m):
        return (v + m - 1) // m * m

    # Size the lane tile against VMEM (conservative for v7x's 32 MiB scoped /
    # 64 MiB physical): ~4 MiB per input tile, double-buffered by BlockSpec.
    vmem_budget = 4 * 1024 * 1024
    max_tile = max(128, (vmem_budget // max(1, c * itemsize)) // 128 * 128)
    tile = min(round_up(max(tile_n, 128), 128), max_tile, round_up(n, 128))

    tiles_total = -(-n // tile)                       # cdiv
    num_splits = 2 if tiles_total >= 2 else 1         # megacore split on v7x
    tiles_per_split = -(-tiles_total // num_splits)
    n_pad = num_splits * tiles_per_split * tile

    # Pad ragged N with zero logits / dummy targets; masked inside the kernel.
    x = inputs
    t = targets.astype(jnp.int32)
    if n_pad != n:
        x = jnp.pad(x, ((0, n_pad - n), (0, 0)))
        t = jnp.pad(t, (0, n_pad - n))
    xt = jnp.transpose(x)                             # (C, n_pad): N on lanes
    t2 = t.reshape(1, n_pad)                          # lane-dense targets row

    kernel = functools.partial(
        _efl_kernel,
        alpha=float(alpha), gamma=float(gamma),
        n_total=n, tile_n=tile, tiles_per_split=tiles_per_split)

    f_part, s_part = pl.pallas_call(
        kernel,
        out_shape=(jax.ShapeDtypeStruct((num_splits, 1, tile), jnp.float32),
                   jax.ShapeDtypeStruct((num_splits, 1, tile), jnp.float32)),
        grid_spec=pltpu.PrefetchScalarGridSpec(
            num_scalar_prefetch=0,
            grid=(num_splits, tiles_per_split),
            in_specs=[
                pl.BlockSpec((c, tile),
                             lambda s, j: (0, s * tiles_per_split + j)),
                pl.BlockSpec((1, tile),
                             lambda s, j: (0, s * tiles_per_split + j)),
            ],
            out_specs=[
                pl.BlockSpec((1, 1, tile), lambda s, j: (s, 0, 0)),
                pl.BlockSpec((1, 1, tile), lambda s, j: (s, 0, 0)),
            ],
        ),
        compiler_params=pltpu.CompilerParams(
            dimension_semantics=("parallel", "arbitrary")),
    )(xt, t2)

    # Final combine (tiny): cross-lane reduce once, mean over the ORIGINAL N,
    # Frobenius norm of the logits, plus regularizer.
    focal_mean = jnp.sum(f_part) / jnp.float32(n)
    reg = jnp.float32(regularizer_weight) * jnp.sqrt(jnp.sum(s_part))
    return focal_mean + reg


def _reference(inputs, targets, alpha=0.25, gamma=2.0, regularizer_weight=0.001):
    logp = jax.nn.log_softmax(inputs.astype(jnp.float32), axis=-1)
    ce = -jnp.take_along_axis(logp, targets[:, None].astype(jnp.int32), axis=-1)[:, 0]
    pt = jnp.exp(-ce)
    focal = alpha * (1.0 - pt) ** gamma * ce
    reg = regularizer_weight * jnp.sqrt(jnp.sum(inputs.astype(jnp.float32) ** 2))
    return focal.mean() + reg


if __name__ == "__main__":
    key = jax.random.PRNGKey(0)
    kx, kt = jax.random.split(key)
    N, C = 128, 10                      # small synthetic classification batch
    inputs = jax.random.normal(kx, (N, C), dtype=jnp.float32) * 2.0
    targets = jax.random.randint(kt, (N,), 0, C, dtype=jnp.int32)

    loss = equalized_focal_loss_with_regularizer(inputs, targets)
    loss = jax.block_until_ready(loss)

    ref = _reference(inputs, targets)
    assert jnp.allclose(loss, ref, rtol=1e-5, atol=1e-6), (loss, ref)

    # Also exercise the ragged / multi-tile / padded path once.
    N2, C2 = 300, 17
    kx2, kt2 = jax.random.split(jax.random.PRNGKey(0), 2)
    inputs2 = jax.random.normal(kx2, (N2, C2), dtype=jnp.float32)
    targets2 = jax.random.randint(kt2, (N2,), 0, C2, dtype=jnp.int32)
    loss2 = jax.block_until_ready(
        equalized_focal_loss_with_regularizer(inputs2, targets2, tile_n=128))
    ref2 = _reference(inputs2, targets2)
    assert jnp.allclose(loss2, ref2, rtol=1e-5, atol=1e-6), (loss2, ref2)

    print("KERNEL_OK")
</pallas_src>

<mosaic_0001>
module attributes {stable_mosaic.version = 11 : i64} {
  func.func @_efl_kernel(%arg0: i32, %arg1: i32, %arg2: memref<10x128xf32, #tpu.memory_space<vmem>>, %arg3: memref<1x128xi32, #tpu.memory_space<vmem>>, %arg4: memref<1x1x128xf32, #tpu.memory_space<vmem>>, %arg5: memref<1x1x128xf32, #tpu.memory_space<vmem>>) attributes {dimension_semantics = [#tpu.dimension_semantics<parallel>, #tpu.dimension_semantics<arbitrary>], iteration_bounds = array<i64: 1, 1>, scalar_prefetch = 0 : i64, scratch_operands = 0 : i64, tpu.core_type = #tpu.core_type<tc>, window_params = [{transform_indices = @transform_0, window_bounds = array<i64: 10, 128>}, {transform_indices = @transform_1, window_bounds = array<i64: 1, 128>}, {transform_indices = @transform_2, window_bounds = array<i64: 1, 1, 128>}, {transform_indices = @transform_3, window_bounds = array<i64: 1, 1, 128>}]} {
    %c0_i32 = arith.constant 0 : i32
    %0 = arith.cmpi eq, %arg1, %c0_i32 : i32
    %1 = arith.extui %0 : i1 to i32
    %c0_i32_0 = arith.constant 0 : i32
    %2 = arith.cmpi ne, %1, %c0_i32_0 : i32
    scf.if %2 {
      %cst_27 = arith.constant 0.000000e+00 : f32
      %59 = vector.broadcast %cst_27 : f32 to vector<1x1x128xf32>
      %c0_28 = arith.constant 0 : index
      %c0_29 = arith.constant 0 : index
      %c0_30 = arith.constant 0 : index
      %60 = vector.load %arg4[%c0_28, %c0_29, %c0_30] : memref<1x1x128xf32, #tpu.memory_space<vmem>>, vector<1x1x128xf32>
      tpu.vector_store %arg4[%c0_28, %c0_29, %c0_30], %59 {strides = array<i32>} : memref<1x1x128xf32, #tpu.memory_space<vmem>>, vector<1x1x128xf32>,
      %cst_31 = arith.constant 0.000000e+00 : f32
      %61 = vector.broadcast %cst_31 : f32 to vector<1x1x128xf32>
      %c0_32 = arith.constant 0 : index
      %c0_33 = arith.constant 0 : index
      %c0_34 = arith.constant 0 : index
      %62 = vector.load %arg5[%c0_32, %c0_33, %c0_34] : memref<1x1x128xf32, #tpu.memory_space<vmem>>, vector<1x1x128xf32>
      tpu.vector_store %arg5[%c0_32, %c0_33, %c0_34], %61 {strides = array<i32>} : memref<1x1x128xf32, #tpu.memory_space<vmem>>, vector<1x1x128xf32>,
    } else {
    }
    %c0 = arith.constant 0 : index
    %c0_1 = arith.constant 0 : index
    %3 = vector.load %arg2[%c0, %c0_1] : memref<10x128xf32, #tpu.memory_space<vmem>>, vector<10x128xf32>
    %c0_2 = arith.constant 0 : index
    %c0_3 = arith.constant 0 : index
    %4 = vector.load %arg3[%c0_2, %c0_3] : memref<1x128xi32, #tpu.memory_space<vmem>>, vector<1x128xi32>
    %5 = tpu.iota {dimensions = array<i32: 0>} : vector<10x128xi32>
    %6 = vector.broadcast %4 : vector<1x128xi32> to vector<10x128xi32>
    %7 = arith.cmpi eq, %5, %6 : vector<10x128xi32>
    %cst = arith.constant dense<0xFF800000> : vector<128xf32>
    %8 = vector.multi_reduction <maximumf>, %3, %cst [0] : vector<10x128xf32> to vector<128xf32>
    %9 = vector.shape_cast %8 : vector<128xf32> to vector<1x128xf32>
    %10 = vector.broadcast %9 : vector<1x128xf32> to vector<10x128xf32>
    %11 = arith.subf %3, %10 : vector<10x128xf32>
    %12 = math.exp %11 : vector<10x128xf32>
    %cst_4 = arith.constant dense<0.000000e+00> : vector<128xf32>
    %13 = vector.multi_reduction <add>, %12, %cst_4 [0] : vector<10x128xf32> to vector<128xf32>
    %14 = vector.shape_cast %13 : vector<128xf32> to vector<1x128xf32>
    %cst_5 = arith.constant 0.000000e+00 : f32
    %15 = vector.broadcast %cst_5 : f32 to vector<10x128xf32>
    %16 = arith.select %7, %11, %15 : vector<10x128xi1>, vector<10x128xf32>
    %cst_6 = arith.constant dense<0.000000e+00> : vector<128xf32>
    %17 = vector.multi_reduction <add>, %16, %cst_6 [0] : vector<10x128xf32> to vector<128xf32>
    %18 = vector.shape_cast %17 : vector<128xf32> to vector<1x128xf32>
    %cst_7 = arith.constant 0.000000e+00 : f32
    %19 = vector.broadcast %cst_7 : f32 to vector<10x128xf32>
    %20 = arith.select %7, %12, %19 : vector<10x128xi1>, vector<10x128xf32>
    %cst_8 = arith.constant dense<0.000000e+00> : vector<128xf32>
    %21 = vector.multi_reduction <add>, %20, %cst_8 [0] : vector<10x128xf32> to vector<128xf32>
    %22 = vector.shape_cast %21 : vector<128xf32> to vector<1x128xf32>
    %23 = math.log %14 : vector<1x128xf32>
    %24 = arith.subf %23, %18 : vector<1x128xf32>
    %25 = arith.divf %22, %14 : vector<1x128xf32>
    %cst_9 = arith.constant 1.000000e+00 : f32
    %26 = vector.broadcast %cst_9 : f32 to vector<1x128xf32>
    %27 = arith.subf %26, %25 : vector<1x128xf32>
    %cst_10 = arith.constant 0.000000e+00 : f32
    %28 = vector.broadcast %cst_10 : f32 to vector<1x128xf32>
    %29 = arith.maximumf %27, %28 : vector<1x128xf32>
    %30 = arith.mulf %29, %29 : vector<1x128xf32>
    %cst_11 = arith.constant 2.500000e-01 : f32
    %31 = vector.broadcast %cst_11 : f32 to vector<1x128xf32>
    %32 = arith.mulf %31, %30 : vector<1x128xf32>
    %33 = arith.mulf %32, %24 : vector<1x128xf32>
    %c1_i32 = arith.constant 1 : i32
    %34 = arith.muli %arg0, %c1_i32 : i32
    %35 = arith.addi %34, %arg1 : i32
    %36 = tpu.iota {dimensions = array<i32: 1>} : vector<1x128xi32>
    %c128_i32 = arith.constant 128 : i32
    %37 = arith.muli %35, %c128_i32 : i32
    %38 = vector.broadcast %37 : i32 to vector<1x128xi32>
    %39 = arith.addi %38, %36 : vector<1x128xi32>
    %c128_i32_12 = arith.constant 128 : i32
    %40 = vector.broadcast %c128_i32_12 : i32 to vector<1x128xi32>
    %41 = arith.cmpi slt, %39, %40 : vector<1x128xi32>
    %cst_13 = arith.constant 0.000000e+00 : f32
    %42 = vector.broadcast %cst_13 : f32 to vector<1x128xf32>
    %43 = arith.select %41, %33, %42 : vector<1x128xi1>, vector<1x128xf32>
    %c0_14 = arith.constant 0 : index
    %c0_15 = arith.constant 0 : index
    %c0_16 = arith.constant 0 : index
    %44 = vector.load %arg4[%c0_14, %c0_15, %c0_16] : memref<1x1x128xf32, #tpu.memory_space<vmem>>, vector<1x1x128xf32>
    %45 = vector.shape_cast %44 : vector<1x1x128xf32> to vector<1x128xf32>
    %46 = arith.addf %45, %43 : vector<1x128xf32>
    %c0_17 = arith.constant 0 : index
    %c0_18 = arith.constant 0 : index
    %c0_19 = arith.constant 0 : index
    %47 = vector.load %arg4[%c0_17, %c0_18, %c0_19] : memref<1x1x128xf32, #tpu.memory_space<vmem>>, vector<1x1x128xf32>
    %48 = vector.shape_cast %47 : vector<1x1x128xf32> to vector<1x128xf32>
    %49 = vector.shape_cast %46 : vector<1x128xf32> to vector<1x1x128xf32>
    tpu.vector_store %arg4[%c0_17, %c0_18, %c0_19], %49 {strides = array<i32>} : memref<1x1x128xf32, #tpu.memory_space<vmem>>, vector<1x1x128xf32>,
    %c0_20 = arith.constant 0 : index
    %c0_21 = arith.constant 0 : index
    %c0_22 = arith.constant 0 : index
    %50 = vector.load %arg5[%c0_20, %c0_21, %c0_22] : memref<1x1x128xf32, #tpu.memory_space<vmem>>, vector<1x1x128xf32>
    %51 = vector.shape_cast %50 : vector<1x1x128xf32> to vector<1x128xf32>
    %52 = arith.mulf %3, %3 : vector<10x128xf32>
    %cst_23 = arith.constant dense<0.000000e+00> : vector<128xf32>
    %53 = vector.multi_reduction <add>, %52, %cst_23 [0] : vector<10x128xf32> to vector<128xf32>
    %54 = vector.shape_cast %53 : vector<128xf32> to vector<1x128xf32>
    %55 = arith.addf %51, %54 : vector<1x128xf32>
    %c0_24 = arith.constant 0 : index
    %c0_25 = arith.constant 0 : index
    %c0_26 = arith.constant 0 : index
    %56 = vector.load %arg5[%c0_24, %c0_25, %c0_26] : memref<1x1x128xf32, #tpu.memory_space<vmem>>, vector<1x1x128xf32>
    %57 = vector.shape_cast %56 : vector<1x1x128xf32> to vector<1x128xf32>
    %58 = vector.shape_cast %55 : vector<1x128xf32> to vector<1x1x128xf32>
    tpu.vector_store %arg5[%c0_24, %c0_25, %c0_26], %58 {strides = array<i32>} : memref<1x1x128xf32, #tpu.memory_space<vmem>>, vector<1x1x128xf32>,
    return
  }
  func.func @transform_0(%arg0: i32, %arg1: i32) -> (i32, i32) {
    %c1_i32 = arith.constant 1 : i32
    %0 = arith.muli %arg0, %c1_i32 : i32
    %1 = arith.addi %0, %arg1 : i32
    %c0_i32 = arith.constant 0 : i32
    %c0_i32_0 = arith.constant 0 : i32
    return %c0_i32, %1 : i32, i32
  }
  func.func @transform_1(%arg0: i32, %arg1: i32) -> (i32, i32) {
    %c1_i32 = arith.constant 1 : i32
    %0 = arith.muli %arg0, %c1_i32 : i32
    %1 = arith.addi %0, %arg1 : i32
    %c0_i32 = arith.constant 0 : i32
    %c0_i32_0 = arith.constant 0 : i32
    return %c0_i32, %1 : i32, i32
  }
  func.func @transform_2(%arg0: i32, %arg1: i32) -> (i32, i32, i32) {
    %c0_i32 = arith.constant 0 : i32
    %c0_i32_0 = arith.constant 0 : i32
    %c0_i32_1 = arith.constant 0 : i32
    return %arg0, %c0_i32, %c0_i32_0 : i32, i32, i32
  }
  func.func @transform_3(%arg0: i32, %arg1: i32) -> (i32, i32, i32) {
    %c0_i32 = arith.constant 0 : i32
    %c0_i32_0 = arith.constant 0 : i32
    %c0_i32_1 = arith.constant 0 : i32
    return %arg0, %c0_i32, %c0_i32_0 : i32, i32, i32
  }
}

</mosaic_0001>

<llo_original>
// kernel: tpu_custom_call.1
$region0: #{tpu_custom_call.1}
  #allocation0 [shape = 'u32[]', space=smem, size = 0x4, offset = 0x4, fixed_abs, tag = 'smem constant byte address 0x4 - core index']
  #allocation1 [shape = 'u32[72,128]{1,0:T(1,128)}', space=vmem, size = 0x9000, scoped, tag = 'internal scratch']
  %s0 = inlined_call_operand.hbm [shape: f32[10,128], index: 0, kind: input, shape index: {}]
  %s1 = inlined_call_operand.hbm [shape: s32[1,128], index: 1, kind: input, shape index: {}]
  %s2 = inlined_call_operand.hbm [shape: f32[1,1,128], index: 2, kind: output, shape index: {0}]
  %s3 = inlined_call_operand.hbm [shape: f32[1,1,128], index: 3, kind: output, shape index: {1}]
  %4 = xla_tuple %s2, %s3
  %s5 = sld [smem:[#allocation0]]
  $region38: #{tpu_custom_call.1} parent=0
    _
  %s7 = ssub.s32 1, %s5
  %s8 = scalar_select 0, %s7, %s5
  $region1: #{tpu_custom_call.1} parent=0
    #allocation2 [shape = 'u8[8192]{0}', space=vmem, size = 0x2000, scoped, tag = 'input window, operand 0, single buffered']
    #allocation3 [shape = 's32[1]{0}', space=sflag, size = 0x4, scoped, tag = 'scoped memory for tpu_custom_call.1']
    #allocation4 [shape = 's32[1]{0}', space=sflag, size = 0x4, scoped, tag = 'scoped memory for tpu_custom_call.1']
    #allocation5 [shape = 'u8[512]{0}', space=vmem, size = 0x400, scoped, tag = 'input window, operand 1, single buffered']
    #allocation6 [shape = 's32[1]{0}', space=sflag, size = 0x4, scoped, tag = 'scoped memory for tpu_custom_call.1']
    #allocation7 [shape = 'u8[512]{0}', space=vmem, size = 0x400, scoped, tag = 'output window, operand 0, single buffered']
    #allocation8 [shape = 'u8[512]{0}', space=vmem, size = 0x400, scoped, tag = 'output window, operand 1, single buffered']
    #allocation9 [shape = 's32[1]{0}', space=sflag, size = 0x4, scoped, tag = 'scoped memory for tpu_custom_call.1']
    %9 = vsyncpa [#allocation3], 0
    %10 = vsyncpa [#allocation6], 0
    %11 = vsyncpa [#allocation4], 0
    %12 = vsyncpa [#allocation9], 0
    // Predicated region
    $region2: #{tpu_custom_call.1} parent=1 // pred_check
      _
    $region3: #{tpu_custom_call.1} parent=1 // pred_check_branch
      %14 = sbr.rel (0) target = $region5
    $region4: #{tpu_custom_call.1} parent=1 // pred_region
      %s15 = sadd.s32 0, 0
      %17 = vsyncadd [#allocation3], 0
      %s18 = smul.addr %s15, 8
      %s19 = scalar_lea.hbm %s0, %s18
      %s20 = sshll.u32 %s19, 4
      %s21 = int_to_ptr.hbm [resolvable:$true] %s20
      %s22 = sshll.u32 [#allocation2], 4
      %s23 = int_to_ptr.vmem [resolvable:$true] %s22
      %28 = dma.hbm_to_vmem [thread:$0]  %s21, 256, %s23, [#allocation3], 128, 128, 8
    $region5: #{tpu_custom_call.1} parent=1 // pred_fallthru
      _
    // Predicated region
    $region6: #{tpu_custom_call.1} parent=1 // pred_check
      _
    $region7: #{tpu_custom_call.1} parent=1 // pred_check_branch
      %30 = sbr.rel (0) target = $region9
    $region8: #{tpu_custom_call.1} parent=1 // pred_region
      %s31 = sadd.s32 0, 0
      %33 = vsyncadd [#allocation6], 0
      %s34 = scalar_lea.hbm %s1, %s31
      %s36 = sshll.u32 %s34, 4
      %s37 = int_to_ptr.hbm [resolvable:$true] %s36
      %s38 = sshll.u32 [#allocation5], 4
      %s39 = int_to_ptr.vmem [resolvable:$true] %s38
      %41 = dma.hbm_to_vmem [thread:$0]  %s37, 16, %s39, [#allocation6]
    $region9: #{tpu_custom_call.1} parent=1 // pred_fallthru
      _
    // Predicated region
    $region10: #{tpu_custom_call.1} parent=1 // pred_check
      _
    $region11: #{tpu_custom_call.1} parent=1 // pred_check_branch
      %43 = sbr.rel (0) target = $region13
    $region12: #{tpu_custom_call.1} parent=1 // pred_region
      %45 = dma.done [#allocation3], 256
    $region13: #{tpu_custom_call.1} parent=1 // pred_fallthru
      _
    // Predicated region
    $region14: #{tpu_custom_call.1} parent=1 // pred_check
      _
    $region15: #{tpu_custom_call.1} parent=1 // pred_check_branch
      %47 = sbr.rel (0) target = $region17
    $region16: #{tpu_custom_call.1} parent=1 // pred_region
      %49 = dma.done [#allocation6], 16
    $region17: #{tpu_custom_call.1} parent=1 // pred_fallthru
      _
    %s50 = sadd.s32 0, 0
    %s51 = sadd.s32 0, 0
    %p52 = scmp.eq.s32.totalorder 0, 0
    // Predicated region
    $region18: #{tpu_custom_call.1} parent=1 // pred_check
      %p53 = pneg %p52
    $region19: #{tpu_custom_call.1} parent=1 // pred_check_branch
      %55 = sbr.rel (%p53) target = $region21
    $region20: #{tpu_custom_call.1} parent=1 // pred_region
      %56 = vst [vmem:[#allocation7] sm:$0x1] 0.0
      %57 = vst [vmem:[#allocation8] sm:$0x1] 0.0
    $region21: #{tpu_custom_call.1} parent=1 // pred_fallthru
      _
    %v58 = vld [vmem:[#allocation2] sm:$0xff]
    %v59 = vld [vmem:[#allocation2 + $0x8] sm:$0x3]
    %v60 = vld [vmem:[#allocation5] sm:$0x1]
    %v61 = vlaneseq
    %v62 = vshrl.u32 %v61, 7
    %v63 = vadd.s32 %v62, 8
    %v64 = vperm.slane %v60, 0
    %vm65 = vcmp.eq.s32.totalorder %v62, %v64
    %vm66 = vcmp.eq.s32.totalorder %v63, %v64
    %vm67 = vcmask 1041408
    %v68 = vsel %vm67, %v59, -inf
    %v69 = vmax.f32 %v58, %v68
    %v70 = vrot.slane %v69, 4
    %v71 = vmax.f32 %v69, %v70
    %v72 = vrot.slane %v71, 2
    %v73 = vmax.f32 %v71, %v72
    %v74 = vrot.slane %v73, 1
    %v75 = vmax.f32 %v73, %v74
    %v76 = vsub.f32 %v58, %v75
    %v77 = vsub.f32 %v59, %v75
    %v78 = vmul.f32 %v76, 1.442695
    %v79 = vpow.pop %v78
    %v80 = vmul.f32 %v77, 1.442695
    %v81 = vpow.pop %v80
    %v82 = vsel %vm67, %v81, 0.0
    %v83 = vadd.f32 %v79, %v82
    %v84 = vrot.slane %v83, 4
    %v85 = vadd.f32 %v83, %v84
    %v86 = vrot.slane %v85, 2
    %v87 = vadd.f32 %v85, %v86
    %v88 = vrot.slane %v87, 1
    %v89 = vadd.f32 %v87, %v88
    %v90 = vsel %vm65, %v76, 0.0
    %v91 = vsel %vm66, %v77, 0.0
    %v92 = vsel %vm67, %v91, 0.0
    %v93 = vadd.f32 %v90, %v92
    %v94 = vrot.slane %v93, 4
    %v95 = vadd.f32 %v93, %v94
    %v96 = vrot.slane %v95, 2
    %v97 = vadd.f32 %v95, %v96
    %v98 = vrot.slane %v97, 1
    %v99 = vadd.f32 %v97, %v98
    %v100 = vsel %vm65, %v79, 0.0
    %v101 = vsel %vm66, %v81, 0.0
    %v102 = vsel %vm67, %v101, 0.0
    %v103 = vadd.f32 %v100, %v102
    %v104 = vrot.slane %v103, 4
    %v105 = vadd.f32 %v103, %v104
    %v106 = vrot.slane %v105, 2
    %v107 = vadd.f32 %v105, %v106
    %v108 = vrot.slane %v107, 1
    %v109 = vadd.f32 %v107, %v108
    %v110 = vlog2.pop %v89
    %v111 = vmul.f32 %v110, 0.6931472
    %v112 = vsub.f32 %v111, %v99
    %v113 = vrcp.pop %v89
    %v114 = vmul.f32 %v89, %v113
    %v115 = vsub.f32 1.0, %v114
    %v116 = vmul.f32 %v113, %v115
    %v117 = vadd.f32 %v113, %v116
    %vm118 = vweird.f32 %v89
    %vm119 = vweird.f32 %v113
    %vm120 = vmor %vm118, %vm119
    %v121 = vsel %vm120, %v113, %v117
    %v122 = vand.u32 2147483647, %v89
    %vm123 = vcmp.eq.f32.partialorder %v122, 8.507059e+37
    %v124 = vand.u32 %v89, 2147483648
    %v125 = vor.u32 1.1754944e-38, %v124
    %v126 = vsel %vm123, %v125, %v121
    %v127 = vmul.f32 %v109, %v126
    %v128 = vsub.f32 1.0, %v127
    %v129 = vmax.f32 %v128, 0.0
    %v130 = vmul.f32 %v129, %v129
    %v131 = vmul.f32 %v130, 0.25
    %v132 = vmul.f32 %v131, %v112
    %s133 = sadd.s32 0, 0
    %v134 = vlaneseq
    %v135 = vand.u32 %v134, 127
    %s136 = smul.u32 %s133, 128
    %v137 = vstv %s136
    %v138 = vadd.s32 %v137, %v135
    %vm139 = vcmp.lt.s32.totalorder %v138, 128
    %v140 = vsel %vm139, %v132, 0.0
    %v141 = vld [vmem:[#allocation7] sm:$0x1]
    %v142 = vadd.f32 %v141, %v140
    %143 = vst [vmem:[#allocation7] sm:$0x1] %v142
    %v144 = vld [vmem:[#allocation8] sm:$0x1]
    %v145 = vmul.f32 %v58, %v58
    %v146 = vmul.f32 %v59, %v59
    %v147 = vsel %vm67, %v146, 0.0
    %v148 = vadd.f32 %v145, %v147
    %v149 = vrot.slane %v148, 4
    %v150 = vadd.f32 %v148, %v149
    %v151 = vrot.slane %v150, 2
    %v152 = vadd.f32 %v150, %v151
    %v153 = vrot.slane %v152, 1
    %v154 = vadd.f32 %v152, %v153
    %v155 = vadd.f32 %v144, %v154
    %156 = vst [vmem:[#allocation8] sm:$0x1] %v155
    // Predicated region
    $region22: #{tpu_custom_call.1} parent=1 // pred_check
      _
    $region23: #{tpu_custom_call.1} parent=1 // pred_check_branch
      %158 = sbr.rel (0) target = $region25
    $region24: #{tpu_custom_call.1} parent=1 // pred_region
      %160 = vsyncadd [#allocation4], 0
      %s162 = sshll.u32 [#allocation7], 4
      %s163 = int_to_ptr.vmem [resolvable:$true] %s162
      %s164 = sshll.u32 %s2, 4
      %s165 = int_to_ptr.hbm [resolvable:$true] %s164
      %167 = dma.vmem_to_hbm [thread:$0]  %s163, 16, %s165, [#allocation4]
    $region25: #{tpu_custom_call.1} parent=1 // pred_fallthru
      _
    // Predicated region
    $region26: #{tpu_custom_call.1} parent=1 // pred_check
      _
    $region27: #{tpu_custom_call.1} parent=1 // pred_check_branch
      %169 = sbr.rel (0) target = $region29
    $region28: #{tpu_custom_call.1} parent=1 // pred_region
      %171 = vsyncadd [#allocation9], 0
      %s173 = sshll.u32 [#allocation8], 4
      %s174 = int_to_ptr.vmem [resolvable:$true] %s173
      %s175 = sshll.u32 %s3, 4
      %s176 = int_to_ptr.hbm [resolvable:$true] %s175
      %178 = dma.vmem_to_hbm [thread:$0]  %s174, 16, %s176, [#allocation9]
    $region29: #{tpu_custom_call.1} parent=1 // pred_fallthru
      _
    // Predicated region
    $region30: #{tpu_custom_call.1} parent=1 // pred_check
      _
    $region31: #{tpu_custom_call.1} parent=1 // pred_check_branch
      %180 = sbr.rel (0) target = $region33
    $region32: #{tpu_custom_call.1} parent=1 // pred_region
      %182 = dma.done [#allocation4], 16
    $region33: #{tpu_custom_call.1} parent=1 // pred_fallthru
      _
    // Predicated region
    $region34: #{tpu_custom_call.1} parent=1 // pred_check
      _
    $region35: #{tpu_custom_call.1} parent=1 // pred_check_branch
      %184 = sbr.rel (0) target = $region37
    $region36: #{tpu_custom_call.1} parent=1 // pred_region
      %186 = dma.done [#allocation9], 16
    $region37: #{tpu_custom_call.1} parent=1 // pred_fallthru
      _
    %187 = vsyncpa [#allocation3], 1
    %188 = vsyncpa [#allocation6], 1
    %189 = vsyncpa [#allocation4], 1
    %190 = vsyncpa [#allocation9], 1

</llo_original>
